<compile_context>
chip_gen: v6e
topology: v6e:2x2x1
jax: 0.10.0
libtpu: 0.0.40
codegen_flags: <defaults>
</compile_context>

<pallas_src>
import jax
import jax.numpy as jnp
from jax import lax
from jax.experimental import pallas as pl
from jax.experimental.pallas import tpu as pltpu

SMOOTH = 1e-6


def _tpu_config():
    """Returns (num_tensorcores, per-input step bytes, vmem_limit_bytes)."""
    vmem_phys = 64 * 1024 * 1024  # conservative fallback (v7x-sized)
    try:
        vmem_phys = int(getattr(pltpu.get_tpu_info(), "vmem_capacity_bytes", vmem_phys))
    except Exception:
        pass
    num_cores = 1
    try:
        kind = jax.devices()[0].device_kind.lower()
        if "v7" in kind:           # v7x: 2 TensorCores per chip/device
            num_cores = 2
    except Exception:
        pass
    if vmem_phys >= 96 * 1024 * 1024:        # v5e / v6e class (128 MiB physical)
        per_input_step = 8 * 1024 * 1024
        vmem_limit = 40 * 1024 * 1024
    else:                                    # v7x class (64 MiB physical)
        per_input_step = 10 * 1024 * 1024
        vmem_limit = 48 * 1024 * 1024
    return num_cores, per_input_step, vmem_limit


_NUM_CORES, _PER_INPUT_STEP_BYTES, _VMEM_LIMIT_BYTES = _tpu_config()


def _make_dice_kernel(tr, C, rows, spc, nblocks, needs_mask, acc_sub, has_core_axis):
    """Build the kernel with static tiling parameters baked in."""

    def kernel(o_ref, t_ref, part_ref, acc_it, acc_den):
        if has_core_axis:
            i = pl.program_id(0)          # core-parallel axis
            j = pl.program_id(1)          # reduction axis (per core)
            nsteps = pl.num_programs(1)
            g = i * spc + j               # unclamped global block index
        else:
            j = pl.program_id(0)
            nsteps = pl.num_programs(0)
            g = j

        @pl.when(j == 0)
        def _init():
            acc_it[...] = jnp.zeros_like(acc_it)
            acc_den[...] = jnp.zeros_like(acc_den)

        o = o_ref[...].astype(jnp.float32)
        t = t_ref[...].astype(jnp.float32)

        def _accumulate(ov, tv):
            # (tr, C) -> (tr//acc_sub, acc_sub, C) is a free re-view; the axis-0
            # sum is a chain of aligned full-vreg VALU adds (no per-step XLU).
            acc_it[...] += (ov * tv).reshape(tr // acc_sub, acc_sub, C).sum(axis=0)
            acc_den[...] += (ov + tv).reshape(tr // acc_sub, acc_sub, C).sum(axis=0)

        if needs_mask:
            # Only edge / clamp-duplicated blocks pay the iota+select mask.
            @pl.when(g < nblocks - 1)
            def _fast():
                _accumulate(o, t)

            @pl.when(g >= nblocks - 1)
            def _masked():
                row_ids = g * tr + lax.broadcasted_iota(jnp.int32, (tr, 1), 0)
                valid = row_ids < rows
                _accumulate(jnp.where(valid, o, 0.0), jnp.where(valid, t, 0.0))
        else:
            _accumulate(o, t)

        @pl.when(j == nsteps - 1)
        def _finalize():
            part_ref[0, 0] = jnp.sum(acc_it[...])
            part_ref[0, 1] = jnp.sum(acc_den[...])

    return kernel


def _pick_lane_width(n):
    for cand in (1024, 512, 256, 128):
        if n % cand == 0:
            return cand
    return None


@jax.jit
def dice_loss(output, target, smooth=SMOOTH):
    assert output.shape == target.shape, "output/target must have same shape"
    n = output.size

    o_flat = output.reshape(-1)
    t_flat = target.reshape(-1)

    # Lane-dense slab width: widest multiple of 128 that divides n so the
    # reshape is a free re-view (no extra HBM pass).
    C = _pick_lane_width(n)
    tail_inter = jnp.float32(0.0)
    tail_den = jnp.float32(0.0)
    if C is None:
        # Ragged element count: reduce the sub-lane-width tail in plain jnp and
        # stream only the lane-aligned main body through the kernel (no full
        # zero-pad rewrite of both inputs).
        # TODO(synk): a manual-DMA (memory_space=pl.ANY) path could stream the
        # main body without the slice copy XLA materializes here.
        C = 1024
        main = (n // C) * C
        to = o_flat[main:].astype(jnp.float32)
        tt = t_flat[main:].astype(jnp.float32)
        tail_inter = jnp.sum(to * tt)
        tail_den = jnp.sum(to) + jnp.sum(tt)
        o_flat = o_flat[:main]
        t_flat = t_flat[:main]

    rows = o_flat.size // C
    if rows == 0:
        # Whole input fits in the tail; no kernel needed.
        dice = (2.0 * tail_inter + smooth) / (tail_den + smooth)
        return 1.0 - dice

    o2 = o_flat.reshape(rows, C)
    t2 = t_flat.reshape(rows, C)

    # Dtype-dependent sublane multiple: 8 (f32) / 16 (bf16) / 32 (int8/fp8).
    sub = max(8, 32 // o2.dtype.itemsize, 32 // t2.dtype.itemsize)

    # Row tile: ~_PER_INPUT_STEP_BYTES per input per step.  Double-buffered
    # footprint = 2 inputs x 2 bufs x per-input stays inside the VMEM limit.
    bytes_per_row = C * max(o2.dtype.itemsize, t2.dtype.itemsize)
    tr = max(_PER_INPUT_STEP_BYTES // bytes_per_row, 1)
    tr = max((tr // sub) * sub, sub)
    if tr >= rows:
        tr = rows                        # single full-extent block is always legal

    nblocks = -(-rows // tr)             # cdiv
    acc_sub = 8 if tr % 8 == 0 else 1    # (8, C) accumulators when possible

    num_cores = min(_NUM_CORES, nblocks)
    if num_cores > 1:
        spc = -(-nblocks // num_cores)   # steps per core
        needs_mask = (nblocks * tr != rows) or (num_cores * spc != nblocks)
        grid = (num_cores, spc)
        # Clamp so over-provisioned steps re-read a valid block; the in-kernel
        # mask zeroes their contribution.
        in_map = lambda i, j: (jnp.minimum(i * spc + j, nblocks - 1), 0)
        out_map = lambda i, j: (i, 0)
        dim_sem = (pltpu.CORE_PARALLEL, pltpu.ARBITRARY)
        has_core_axis = True
    else:
        spc = nblocks
        needs_mask = nblocks * tr != rows
        grid = (nblocks,)
        in_map = lambda j: (j, 0)
        out_map = lambda j: (0, 0)
        dim_sem = ("arbitrary",)
        has_core_axis = False

    kernel = _make_dice_kernel(tr, C, rows, spc, nblocks, needs_mask,
                               acc_sub, has_core_axis)

    parts = pl.pallas_call(
        kernel,
        out_shape=jax.ShapeDtypeStruct((num_cores, 2), jnp.float32),
        grid_spec=pltpu.PrefetchScalarGridSpec(
            num_scalar_prefetch=0,
            grid=grid,
            in_specs=[
                pl.BlockSpec((tr, C), in_map),
                pl.BlockSpec((tr, C), in_map),
            ],
            out_specs=pl.BlockSpec((1, 2), out_map, memory_space=pltpu.SMEM),
            scratch_shapes=[
                pltpu.VMEM((acc_sub, C), jnp.float32),
                pltpu.VMEM((acc_sub, C), jnp.float32),
            ],
        ),
        compiler_params=pltpu.CompilerParams(
            dimension_semantics=dim_sem,
            vmem_limit_bytes=_VMEM_LIMIT_BYTES,
        ),
    )(o2, t2)

    inter = jnp.sum(parts[:, 0]) + tail_inter
    den = jnp.sum(parts[:, 1]) + tail_den
    dice = (2.0 * inter + smooth) / (den + smooth)
    return 1.0 - dice


def dice_loss_ref(output, target, smooth=SMOOTH):
    inter = jnp.sum(output * target)
    dice = (2.0 * inter + smooth) / (jnp.sum(output) + jnp.sum(target) + smooth)
    return 1.0 - dice


if __name__ == "__main__":
    key = jax.random.PRNGKey(0)
    k1, k2 = jax.random.split(key)

    # NCHW-like inputs: batch=2, channels=4, spatial=16x16
    output = jax.nn.sigmoid(jax.random.normal(k1, (2, 4, 16, 16), jnp.float32))
    target = (jax.random.uniform(k2, (2, 4, 16, 16)) > 0.5).astype(jnp.float32)

    loss = dice_loss(output, target)
    loss = jax.block_until_ready(loss)

    ref = dice_loss_ref(output, target)
    assert jnp.allclose(loss, ref, rtol=1e-5, atol=1e-6), (loss, ref)

    print("KERNEL_OK")
</pallas_src>

<mosaic_0001>
module attributes {stable_mosaic.version = 11 : i64} {
  func.func @kernel(%arg0: i32, %arg1: memref<2x1024xf32, #tpu.memory_space<vmem>>, %arg2: memref<2x1024xf32, #tpu.memory_space<vmem>>, %arg3: memref<1x2xf32, #tpu.memory_space<smem>>, %arg4: memref<1x1024xf32, #tpu.memory_space<vmem>>, %arg5: memref<1x1024xf32, #tpu.memory_space<vmem>>) attributes {dimension_semantics = [#tpu.dimension_semantics<arbitrary>], iteration_bounds = array<i64: 1>, scalar_prefetch = 0 : i64, scratch_operands = 2 : i64, tpu.core_type = #tpu.core_type<tc>, window_params = [{transform_indices = @transform_0, window_bounds = array<i64: 2, 1024>}, {transform_indices = @transform_1, window_bounds = array<i64: 2, 1024>}, {transform_indices = @transform_2, window_bounds = array<i64: 1, 2>}]} {
    %c0_i32 = arith.constant 0 : i32
    %0 = arith.cmpi eq, %arg0, %c0_i32 : i32
    %1 = arith.extui %0 : i1 to i32
    %c0_i32_0 = arith.constant 0 : i32
    %2 = arith.cmpi ne, %1, %c0_i32_0 : i32
    scf.if %2 {
      %cst_15 = arith.constant 0.000000e+00 : f32
      %20 = vector.broadcast %cst_15 : f32 to vector<1x1024xf32>
      %c0_16 = arith.constant 0 : index
      %c0_17 = arith.constant 0 : index
      %21 = vector.load %arg4[%c0_16, %c0_17] : memref<1x1024xf32, #tpu.memory_space<vmem>>, vector<1x1024xf32>
      tpu.vector_store %arg4[%c0_16, %c0_17], %20 {strides = array<i32>} : memref<1x1024xf32, #tpu.memory_space<vmem>>, vector<1x1024xf32>,
      %cst_18 = arith.constant 0.000000e+00 : f32
      %22 = vector.broadcast %cst_18 : f32 to vector<1x1024xf32>
      %c0_19 = arith.constant 0 : index
      %c0_20 = arith.constant 0 : index
      %23 = vector.load %arg5[%c0_19, %c0_20] : memref<1x1024xf32, #tpu.memory_space<vmem>>, vector<1x1024xf32>
      tpu.vector_store %arg5[%c0_19, %c0_20], %22 {strides = array<i32>} : memref<1x1024xf32, #tpu.memory_space<vmem>>, vector<1x1024xf32>,
    } else {
    }
    %c0 = arith.constant 0 : index
    %c0_1 = arith.constant 0 : index
    %3 = vector.load %arg1[%c0, %c0_1] : memref<2x1024xf32, #tpu.memory_space<vmem>>, vector<2x1024xf32>
    %c0_2 = arith.constant 0 : index
    %c0_3 = arith.constant 0 : index
    %4 = vector.load %arg2[%c0_2, %c0_3] : memref<2x1024xf32, #tpu.memory_space<vmem>>, vector<2x1024xf32>
    %c0_4 = arith.constant 0 : index
    %c0_5 = arith.constant 0 : index
    %5 = vector.load %arg4[%c0_4, %c0_5] : memref<1x1024xf32, #tpu.memory_space<vmem>>, vector<1x1024xf32>
    %6 = arith.mulf %3, %4 : vector<2x1024xf32>
    %7 = vector.shape_cast %6 : vector<2x1024xf32> to vector<2x1x1024xf32>
    %cst = arith.constant dense<0.000000e+00> : vector<1x1024xf32>
    %8 = vector.multi_reduction <add>, %7, %cst [0] : vector<2x1x1024xf32> to vector<1x1024xf32>
    %9 = arith.addf %5, %8 : vector<1x1024xf32>
    %c0_6 = arith.constant 0 : index
    %c0_7 = arith.constant 0 : index
    %10 = vector.load %arg4[%c0_6, %c0_7] : memref<1x1024xf32, #tpu.memory_space<vmem>>, vector<1x1024xf32>
    tpu.vector_store %arg4[%c0_6, %c0_7], %9 {strides = array<i32>} : memref<1x1024xf32, #tpu.memory_space<vmem>>, vector<1x1024xf32>,
    %c0_8 = arith.constant 0 : index
    %c0_9 = arith.constant 0 : index
    %11 = vector.load %arg5[%c0_8, %c0_9] : memref<1x1024xf32, #tpu.memory_space<vmem>>, vector<1x1024xf32>
    %12 = arith.addf %3, %4 : vector<2x1024xf32>
    %13 = vector.shape_cast %12 : vector<2x1024xf32> to vector<2x1x1024xf32>
    %cst_10 = arith.constant dense<0.000000e+00> : vector<1x1024xf32>
    %14 = vector.multi_reduction <add>, %13, %cst_10 [0] : vector<2x1x1024xf32> to vector<1x1024xf32>
    %15 = arith.addf %11, %14 : vector<1x1024xf32>
    %c0_11 = arith.constant 0 : index
    %c0_12 = arith.constant 0 : index
    %16 = vector.load %arg5[%c0_11, %c0_12] : memref<1x1024xf32, #tpu.memory_space<vmem>>, vector<1x1024xf32>
    tpu.vector_store %arg5[%c0_11, %c0_12], %15 {strides = array<i32>} : memref<1x1024xf32, #tpu.memory_space<vmem>>, vector<1x1024xf32>,
    %c0_i32_13 = arith.constant 0 : i32
    %17 = arith.cmpi eq, %arg0, %c0_i32_13 : i32
    %18 = arith.extui %17 : i1 to i32
    %c0_i32_14 = arith.constant 0 : i32
    %19 = arith.cmpi ne, %18, %c0_i32_14 : i32
    scf.if %19 {
      %c0_15 = arith.constant 0 : index
      %c0_16 = arith.constant 0 : index
      %20 = vector.load %arg4[%c0_15, %c0_16] : memref<1x1024xf32, #tpu.memory_space<vmem>>, vector<1x1024xf32>
      %21 = vector.shape_cast %20 : vector<1x1024xf32> to vector<1x1x1024xf32>
      %cst_17 = arith.constant dense<0.000000e+00> : vector<1xf32>
      %22 = vector.multi_reduction <add>, %21, %cst_17 [1, 2] : vector<1x1x1024xf32> to vector<1xf32>
      %23 = vector.shape_cast %22 : vector<1xf32> to vector<1x1x1xf32>
      %24 = vector.extract %23[0, 0, 0] : f32 from vector<1x1x1xf32>
      %c0_18 = arith.constant 0 : index
      %c0_19 = arith.constant 0 : index
      %25 = memref.load %arg3[%c0_18, %c0_19] : memref<1x2xf32, #tpu.memory_space<smem>>
      memref.store %24, %arg3[%c0_18, %c0_19] : memref<1x2xf32, #tpu.memory_space<smem>>
      %c0_20 = arith.constant 0 : index
      %c0_21 = arith.constant 0 : index
      %26 = vector.load %arg5[%c0_20, %c0_21] : memref<1x1024xf32, #tpu.memory_space<vmem>>, vector<1x1024xf32>
      %27 = vector.shape_cast %26 : vector<1x1024xf32> to vector<1x1x1024xf32>
      %cst_22 = arith.constant dense<0.000000e+00> : vector<1xf32>
      %28 = vector.multi_reduction <add>, %27, %cst_22 [1, 2] : vector<1x1x1024xf32> to vector<1xf32>
      %29 = vector.shape_cast %28 : vector<1xf32> to vector<1x1x1xf32>
      %30 = vector.extract %29[0, 0, 0] : f32 from vector<1x1x1xf32>
      %c0_23 = arith.constant 0 : index
      %c1 = arith.constant 1 : index
      %31 = memref.load %arg3[%c0_23, %c1] : memref<1x2xf32, #tpu.memory_space<smem>>
      memref.store %30, %arg3[%c0_23, %c1] : memref<1x2xf32, #tpu.memory_space<smem>>
    } else {
    }
    return
  }
  func.func @transform_0(%arg0: i32) -> (i32, i32) {
    %c0_i32 = arith.constant 0 : i32
    %c0_i32_0 = arith.constant 0 : i32
    return %arg0, %c0_i32 : i32, i32
  }
  func.func @transform_1(%arg0: i32) -> (i32, i32) {
    %c0_i32 = arith.constant 0 : i32
    %c0_i32_0 = arith.constant 0 : i32
    return %arg0, %c0_i32 : i32, i32
  }
  func.func @transform_2(%arg0: i32) -> (i32, i32) {
    %c0_i32 = arith.constant 0 : i32
    %c0_i32_0 = arith.constant 0 : i32
    %c0_i32_1 = arith.constant 0 : i32
    return %c0_i32, %c0_i32_0 : i32, i32
  }
}

</mosaic_0001>

<llo_original>
// kernel: dice_loss.1
$region0: #{dice_loss.1}
  #allocation0 [shape = 'u32[]', space=smem, size = 0x4, offset = 0x4, fixed_abs, tag = 'smem constant byte address 0x4 - core index']
  #allocation1 [shape = 'u32[144,128]{1,0:T(1,128)}', space=vmem, size = 0x12000, scoped, tag = 'internal scratch']
  #allocation2 [shape = 'f32[1,1024]{1,0:T(1,128)}', space=vmem, size = 0x1000, scoped, tag = 'scratch operand']
  #allocation3 [shape = 'f32[1,1024]{1,0:T(1,128)}', space=vmem, size = 0x1000, scoped, tag = 'scratch operand']
  %s0 = inlined_call_operand.vmem [shape: f32[2,1024], index: 0, kind: input, shape index: {}]
  %s1 = inlined_call_operand.vmem [shape: f32[2,1024], index: 1, kind: input, shape index: {}]
  %s2 = inlined_call_operand.vmem [shape: f32[1,2], index: 2, kind: output, shape index: {}]
  %s3 = sld [smem:[#allocation0]]
  $region26: #{dice_loss.1} parent=0
    _
  %s5 = ssub.s32 1, %s3
  %s6 = scalar_select 0, %s5, %s3
  $region1: #{dice_loss.1} parent=0
    #allocation4 [shape = 'u8[512]{0}', space=smem, size = 0x200, scoped, tag = 'output window, operand 0, single buffered']
    #allocation5 [shape = 's32[1]{0}', space=sflag, size = 0x4, scoped, tag = 'scoped memory for dice_loss.1']
    %7 = vsyncpa [#allocation5], 0
    // Predicated region
    $region2: #{dice_loss.1} parent=1 // pred_check
      _
    $region3: #{dice_loss.1} parent=1 // pred_check_branch
      %9 = sbr.rel (0) target = $region5
    $region4: #{dice_loss.1} parent=1 // pred_region
      _
    $region5: #{dice_loss.1} parent=1 // pred_fallthru
      _
    // Predicated region
    $region6: #{dice_loss.1} parent=1 // pred_check
      _
    $region7: #{dice_loss.1} parent=1 // pred_check_branch
      %11 = sbr.rel (0) target = $region9
    $region8: #{dice_loss.1} parent=1 // pred_region
      _
    $region9: #{dice_loss.1} parent=1 // pred_fallthru
      _
    %p12 = scmp.eq.s32.totalorder 0, 0
    // Predicated region
    $region10: #{dice_loss.1} parent=1 // pred_check
      %p13 = pneg %p12
    $region11: #{dice_loss.1} parent=1 // pred_check_branch
      %15 = sbr.rel (%p13) target = $region13
    $region12: #{dice_loss.1} parent=1 // pred_region
      %16 = vst [vmem:[#allocation2] sm:$0xff] 0.0
      %17 = vst [vmem:[#allocation3] sm:$0xff] 0.0
    $region13: #{dice_loss.1} parent=1 // pred_fallthru
      _
    %v18 = vld [vmem:[%s0] sm:$0xff]
    %v19 = vld [vmem:[%s0 + $0x8] sm:$0xff]
    %v20 = vld [vmem:[%s1] sm:$0xff]
    %v21 = vld [vmem:[%s1 + $0x8] sm:$0xff]
    %v22 = vld [vmem:[#allocation2] sm:$0xff]
    %v23 = vmul.f32 %v18, %v20
    %v24 = vmul.f32 %v19, %v21
    %v28 = vunpack.c.l.s4 1966171168
    %v29 = vunpack.c.0.s8 %v28
    %v30 = vlaneseq
    %v31 = vshrl.u32 %v30, 7
    %v32 = vsub.s32 %v29, %v31
    %v33 = vrot.slane %v23, %v32
    %v35 = vunpack.c.l.s4 1966171168
    %v36 = vunpack.c.0.s8 %v35
    %v37 = vlaneseq
    %v38 = vshrl.u32 %v37, 7
    %v39 = vsub.s32 %v36, %v38
    %v40 = vrot.slane %v24, %v39
    %v41 = vcombine.low %v33, %v40
    %v42 = vcombine.high %v33, %v40
    %v43 = vlaneseq
    %v44 = vshrl.u32 %v43, 7
    %v45 = vsub.s32 0, %v44
    %v46 = vrot.slane %v41, %v45
    %v47 = vlaneseq
    %v48 = vshrl.u32 %v47, 7
    %v49 = vsub.s32 1, %v48
    %v50 = vrot.slane %v41, %v49
    %v51 = vlaneseq
    %v52 = vshrl.u32 %v51, 7
    %v53 = vsub.s32 2, %v52
    %v54 = vrot.slane %v41, %v53
    %v55 = vlaneseq
    %v56 = vshrl.u32 %v55, 7
    %v57 = vsub.s32 3, %v56
    %v58 = vrot.slane %v41, %v57
    %v59 = vlaneseq
    %v60 = vshrl.u32 %v59, 7
    %v61 = vsub.s32 4, %v60
    %v62 = vrot.slane %v41, %v61
    %v63 = vlaneseq
    %v64 = vshrl.u32 %v63, 7
    %v65 = vsub.s32 5, %v64
    %v66 = vrot.slane %v41, %v65
    %v67 = vlaneseq
    %v68 = vshrl.u32 %v67, 7
    %v69 = vsub.s32 6, %v68
    %v70 = vrot.slane %v41, %v69
    %v71 = vlaneseq
    %v72 = vshrl.u32 %v71, 7
    %v73 = vsub.s32 7, %v72
    %v74 = vrot.slane %v41, %v73
    %v75 = vlaneseq
    %v76 = vshrl.u32 %v75, 7
    %v77 = vsub.s32 0, %v76
    %v78 = vrot.slane %v42, %v77
    %v79 = vlaneseq
    %v80 = vshrl.u32 %v79, 7
    %v81 = vsub.s32 1, %v80
    %v82 = vrot.slane %v42, %v81
    %v83 = vlaneseq
    %v84 = vshrl.u32 %v83, 7
    %v85 = vsub.s32 2, %v84
    %v86 = vrot.slane %v42, %v85
    %v87 = vlaneseq
    %v88 = vshrl.u32 %v87, 7
    %v89 = vsub.s32 3, %v88
    %v90 = vrot.slane %v42, %v89
    %v91 = vlaneseq
    %v92 = vshrl.u32 %v91, 7
    %v93 = vsub.s32 4, %v92
    %v94 = vrot.slane %v42, %v93
    %v95 = vlaneseq
    %v96 = vshrl.u32 %v95, 7
    %v97 = vsub.s32 5, %v96
    %v98 = vrot.slane %v42, %v97
    %v99 = vlaneseq
    %v100 = vshrl.u32 %v99, 7
    %v101 = vsub.s32 6, %v100
    %v102 = vrot.slane %v42, %v101
    %v103 = vlaneseq
    %v104 = vshrl.u32 %v103, 7
    %v105 = vsub.s32 7, %v104
    %v106 = vrot.slane %v42, %v105
    %vm123 = vcmask 1040384
    %v124 = vsel %vm123, %v46, 0.0
    %v125 = vsel %vm123, %v78, 0.0
    %v126 = vadd.f32 %v124, %v125
    %v127 = vsel %vm123, %v50, 0.0
    %v128 = vsel %vm123, %v82, 0.0
    %v129 = vadd.f32 %v127, %v128
    %v130 = vsel %vm123, %v54, 0.0
    %v131 = vsel %vm123, %v86, 0.0
    %v132 = vadd.f32 %v130, %v131
    %v133 = vsel %vm123, %v58, 0.0
    %v134 = vsel %vm123, %v90, 0.0
    %v135 = vadd.f32 %v133, %v134
    %v136 = vsel %vm123, %v62, 0.0
    %v137 = vsel %vm123, %v94, 0.0
    %v138 = vadd.f32 %v136, %v137
    %v139 = vsel %vm123, %v66, 0.0
    %v140 = vsel %vm123, %v98, 0.0
    %v141 = vadd.f32 %v139, %v140
    %v142 = vsel %vm123, %v70, 0.0
    %v143 = vsel %vm123, %v102, 0.0
    %v144 = vadd.f32 %v142, %v143
    %v145 = vsel %vm123, %v74, 0.0
    %v146 = vsel %vm123, %v106, 0.0
    %v147 = vadd.f32 %v145, %v146
    %v156 = vcombine.low %v126, %v129
    %v157 = vcombine.low %v132, %v135
    %v158 = vcombine.low %v138, %v141
    %v159 = vcombine.low %v144, %v147
    %v161 = vunpack.c.l.s4 1966171168
    %v162 = vunpack.c.0.s8 %v161
    %v163 = vlaneseq
    %v164 = vshrl.u32 %v163, 7
    %v165 = vsub.s32 %v162, %v164
    %v166 = vrot.slane %v156, %v165
    %v168 = vunpack.c.l.s4 1966171168
    %v169 = vunpack.c.0.s8 %v168
    %v170 = vlaneseq
    %v171 = vshrl.u32 %v170, 7
    %v172 = vsub.s32 %v169, %v171
    %v173 = vrot.slane %v157, %v172
    %v175 = vunpack.c.l.s4 1966171168
    %v176 = vunpack.c.0.s8 %v175
    %v177 = vlaneseq
    %v178 = vshrl.u32 %v177, 7
    %v179 = vsub.s32 %v176, %v178
    %v180 = vrot.slane %v158, %v179
    %v182 = vunpack.c.l.s4 1966171168
    %v183 = vunpack.c.0.s8 %v182
    %v184 = vlaneseq
    %v185 = vshrl.u32 %v184, 7
    %v186 = vsub.s32 %v183, %v185
    %v187 = vrot.slane %v159, %v186
    %v188 = vcombine.low %v166, %v173
    %v189 = vcombine.low %v180, %v187
    %v191 = vunpack.c.l.s4 1966171168
    %v192 = vunpack.c.0.s8 %v191
    %v193 = vlaneseq
    %v194 = vshrl.u32 %v193, 7
    %v195 = vsub.s32 %v192, %v194
    %v196 = vrot.slane %v188, %v195
    %v198 = vunpack.c.l.s4 1966171168
    %v199 = vunpack.c.0.s8 %v198
    %v200 = vlaneseq
    %v201 = vshrl.u32 %v200, 7
    %v202 = vsub.s32 %v199, %v201
    %v203 = vrot.slane %v189, %v202
    %v204 = vcombine.low %v196, %v203
    %v206 = vadd.f32 %v22, %v204
    %207 = vst [vmem:[#allocation2] sm:$0xff] %v206
    %v208 = vld [vmem:[#allocation3] sm:$0xff]
    %v209 = vadd.f32 %v18, %v20
    %v210 = vadd.f32 %v19, %v21
    %v214 = vunpack.c.l.s4 1966171168
    %v215 = vunpack.c.0.s8 %v214
    %v216 = vlaneseq
    %v217 = vshrl.u32 %v216, 7
    %v218 = vsub.s32 %v215, %v217
    %v219 = vrot.slane %v209, %v218
    %v221 = vunpack.c.l.s4 1966171168
    %v222 = vunpack.c.0.s8 %v221
    %v223 = vlaneseq
    %v224 = vshrl.u32 %v223, 7
    %v225 = vsub.s32 %v222, %v224
    %v226 = vrot.slane %v210, %v225
    %v227 = vcombine.low %v219, %v226
    %v228 = vcombine.high %v219, %v226
    %v229 = vlaneseq
    %v230 = vshrl.u32 %v229, 7
    %v231 = vsub.s32 0, %v230
    %v232 = vrot.slane %v227, %v231
    %v233 = vlaneseq
    %v234 = vshrl.u32 %v233, 7
    %v235 = vsub.s32 1, %v234
    %v236 = vrot.slane %v227, %v235
    %v237 = vlaneseq
    %v238 = vshrl.u32 %v237, 7
    %v239 = vsub.s32 2, %v238
    %v240 = vrot.slane %v227, %v239
    %v241 = vlaneseq
    %v242 = vshrl.u32 %v241, 7
    %v243 = vsub.s32 3, %v242
    %v244 = vrot.slane %v227, %v243
    %v245 = vlaneseq
    %v246 = vshrl.u32 %v245, 7
    %v247 = vsub.s32 4, %v246
    %v248 = vrot.slane %v227, %v247
    %v249 = vlaneseq
    %v250 = vshrl.u32 %v249, 7
    %v251 = vsub.s32 5, %v250
    %v252 = vrot.slane %v227, %v251
    %v253 = vlaneseq
    %v254 = vshrl.u32 %v253, 7
    %v255 = vsub.s32 6, %v254
    %v256 = vrot.slane %v227, %v255
    %v257 = vlaneseq
    %v258 = vshrl.u32 %v257, 7
    %v259 = vsub.s32 7, %v258
    %v260 = vrot.slane %v227, %v259
    %v261 = vlaneseq
    %v262 = vshrl.u32 %v261, 7
    %v263 = vsub.s32 0, %v262
    %v264 = vrot.slane %v228, %v263
    %v265 = vlaneseq
    %v266 = vshrl.u32 %v265, 7
    %v267 = vsub.s32 1, %v266
    %v268 = vrot.slane %v228, %v267
    %v269 = vlaneseq
    %v270 = vshrl.u32 %v269, 7
    %v271 = vsub.s32 2, %v270
    %v272 = vrot.slane %v228, %v271
    %v273 = vlaneseq
    %v274 = vshrl.u32 %v273, 7
    %v275 = vsub.s32 3, %v274
    %v276 = vrot.slane %v228, %v275
    %v277 = vlaneseq
    %v278 = vshrl.u32 %v277, 7
    %v279 = vsub.s32 4, %v278
    %v280 = vrot.slane %v228, %v279
    %v281 = vlaneseq
    %v282 = vshrl.u32 %v281, 7
    %v283 = vsub.s32 5, %v282
    %v284 = vrot.slane %v228, %v283
    %v285 = vlaneseq
    %v286 = vshrl.u32 %v285, 7
    %v287 = vsub.s32 6, %v286
    %v288 = vrot.slane %v228, %v287
    %v289 = vlaneseq
    %v290 = vshrl.u32 %v289, 7
    %v291 = vsub.s32 7, %v290
    %v292 = vrot.slane %v228, %v291
    %v309 = vsel %vm123, %v232, 0.0
    %v310 = vsel %vm123, %v264, 0.0
    %v311 = vadd.f32 %v309, %v310
    %v312 = vsel %vm123, %v236, 0.0
    %v313 = vsel %vm123, %v268, 0.0
    %v314 = vadd.f32 %v312, %v313
    %v315 = vsel %vm123, %v240, 0.0
    %v316 = vsel %vm123, %v272, 0.0
    %v317 = vadd.f32 %v315, %v316
    %v318 = vsel %vm123, %v244, 0.0
    %v319 = vsel %vm123, %v276, 0.0
    %v320 = vadd.f32 %v318, %v319
    %v321 = vsel %vm123, %v248, 0.0
    %v322 = vsel %vm123, %v280, 0.0
    %v323 = vadd.f32 %v321, %v322
    %v324 = vsel %vm123, %v252, 0.0
    %v325 = vsel %vm123, %v284, 0.0
    %v326 = vadd.f32 %v324, %v325
    %v327 = vsel %vm123, %v256, 0.0
    %v328 = vsel %vm123, %v288, 0.0
    %v329 = vadd.f32 %v327, %v328
    %v330 = vsel %vm123, %v260, 0.0
    %v331 = vsel %vm123, %v292, 0.0
    %v332 = vadd.f32 %v330, %v331
    %v341 = vcombine.low %v311, %v314
    %v342 = vcombine.low %v317, %v320
    %v343 = vcombine.low %v323, %v326
    %v344 = vcombine.low %v329, %v332
    %v346 = vunpack.c.l.s4 1966171168
    %v347 = vunpack.c.0.s8 %v346
    %v348 = vlaneseq
    %v349 = vshrl.u32 %v348, 7
    %v350 = vsub.s32 %v347, %v349
    %v351 = vrot.slane %v341, %v350
    %v353 = vunpack.c.l.s4 1966171168
    %v354 = vunpack.c.0.s8 %v353
    %v355 = vlaneseq
    %v356 = vshrl.u32 %v355, 7
    %v357 = vsub.s32 %v354, %v356
    %v358 = vrot.slane %v342, %v357
    %v360 = vunpack.c.l.s4 1966171168
    %v361 = vunpack.c.0.s8 %v360
    %v362 = vlaneseq
    %v363 = vshrl.u32 %v362, 7
    %v364 = vsub.s32 %v361, %v363
    %v365 = vrot.slane %v343, %v364
    %v367 = vunpack.c.l.s4 1966171168
    %v368 = vunpack.c.0.s8 %v367
    %v369 = vlaneseq
    %v370 = vshrl.u32 %v369, 7
    %v371 = vsub.s32 %v368, %v370
    %v372 = vrot.slane %v344, %v371
    %v373 = vcombine.low %v351, %v358
    %v374 = vcombine.low %v365, %v372
    %v376 = vunpack.c.l.s4 1966171168
    %v377 = vunpack.c.0.s8 %v376
    %v378 = vlaneseq
    %v379 = vshrl.u32 %v378, 7
    %v380 = vsub.s32 %v377, %v379
    %v381 = vrot.slane %v373, %v380
    %v383 = vunpack.c.l.s4 1966171168
    %v384 = vunpack.c.0.s8 %v383
    %v385 = vlaneseq
    %v386 = vshrl.u32 %v385, 7
    %v387 = vsub.s32 %v384, %v386
    %v388 = vrot.slane %v374, %v387
    %v389 = vcombine.low %v381, %v388
    %v391 = vadd.f32 %v208, %v389
    %392 = vst [vmem:[#allocation3] sm:$0xff] %v391
    // Predicated region
    $region14: #{dice_loss.1} parent=1 // pred_check
      %p393 = pneg %p12
    $region15: #{dice_loss.1} parent=1 // pred_check_branch
      %395 = sbr.rel (%p393) target = $region17
    $region16: #{dice_loss.1} parent=1 // pred_region
      %v396 = vld [vmem:[#allocation2] sm:$0xff]
      %v398 = vlaneseq
      %v399 = vshrl.u32 %v398, 7
      %v400 = vsub.s32 0, %v399
      %v401 = vrot.slane %v396, %v400
      %v402 = vlaneseq
      %v403 = vshrl.u32 %v402, 7
      %v404 = vsub.s32 1, %v403
      %v405 = vrot.slane %v396, %v404
      %v406 = vlaneseq
      %v407 = vshrl.u32 %v406, 7
      %v408 = vsub.s32 2, %v407
      %v409 = vrot.slane %v396, %v408
      %v410 = vlaneseq
      %v411 = vshrl.u32 %v410, 7
      %v412 = vsub.s32 3, %v411
      %v413 = vrot.slane %v396, %v412
      %v414 = vlaneseq
      %v415 = vshrl.u32 %v414, 7
      %v416 = vsub.s32 4, %v415
      %v417 = vrot.slane %v396, %v416
      %v418 = vlaneseq
      %v419 = vshrl.u32 %v418, 7
      %v420 = vsub.s32 5, %v419
      %v421 = vrot.slane %v396, %v420
      %v422 = vlaneseq
      %v423 = vshrl.u32 %v422, 7
      %v424 = vsub.s32 6, %v423
      %v425 = vrot.slane %v396, %v424
      %v426 = vlaneseq
      %v427 = vshrl.u32 %v426, 7
      %v428 = vsub.s32 7, %v427
      %v429 = vrot.slane %v396, %v428
      %v438 = vsel %vm123, %v401, 0.0
      %v439 = vsel %vm123, %v405, 0.0
      %v440 = vadd.f32 %v438, %v439
      %v441 = vsel %vm123, %v409, 0.0
      %v442 = vadd.f32 %v440, %v441
      %v443 = vsel %vm123, %v413, 0.0
      %v444 = vadd.f32 %v442, %v443
      %v445 = vsel %vm123, %v417, 0.0
      %v446 = vadd.f32 %v444, %v445
      %v447 = vsel %vm123, %v421, 0.0
      %v448 = vadd.f32 %v446, %v447
      %v449 = vsel %vm123, %v425, 0.0
      %v450 = vadd.f32 %v448, %v449
      %v451 = vsel %vm123, %v429, 0.0
      %v452 = vadd.f32 %v450, %v451
      %453 = vadd.xlane.f32.xlu0 %v452
      %v454 = vpop.xlane.xlu0 %453
      %v455 = vrot.slane %v454, 4
      %v456 = vadd.f32 %v454, %v455
      %v457 = vrot.slane %v456, 2
      %v458 = vadd.f32 %v456, %v457
      %v459 = vrot.slane %v458, 1
      %v460 = vadd.f32 %v458, %v459
      %s461 = vtos %v460
      %s462 = scalar_lea.smem [#allocation4], 0
      %463 = sst [smem:[%s462]] %s461
      %v464 = vld [vmem:[#allocation3] sm:$0xff]
      %v466 = vlaneseq
      %v467 = vshrl.u32 %v466, 7
      %v468 = vsub.s32 0, %v467
      %v469 = vrot.slane %v464, %v468
      %v470 = vlaneseq
      %v471 = vshrl.u32 %v470, 7
      %v472 = vsub.s32 1, %v471
      %v473 = vrot.slane %v464, %v472
      %v474 = vlaneseq
      %v475 = vshrl.u32 %v474, 7
      %v476 = vsub.s32 2, %v475
      %v477 = vrot.slane %v464, %v476
      %v478 = vlaneseq
      %v479 = vshrl.u32 %v478, 7
      %v480 = vsub.s32 3, %v479
      %v481 = vrot.slane %v464, %v480
      %v482 = vlaneseq
      %v483 = vshrl.u32 %v482, 7
      %v484 = vsub.s32 4, %v483
      %v485 = vrot.slane %v464, %v484
      %v486 = vlaneseq
      %v487 = vshrl.u32 %v486, 7
      %v488 = vsub.s32 5, %v487
      %v489 = vrot.slane %v464, %v488
      %v490 = vlaneseq
      %v491 = vshrl.u32 %v490, 7
      %v492 = vsub.s32 6, %v491
      %v493 = vrot.slane %v464, %v492
      %v494 = vlaneseq
      %v495 = vshrl.u32 %v494, 7
      %v496 = vsub.s32 7, %v495
      %v497 = vrot.slane %v464, %v496
      %v506 = vsel %vm123, %v469, 0.0
      %v507 = vsel %vm123, %v473, 0.0
      %v508 = vadd.f32 %v506, %v507
      %v509 = vsel %vm123, %v477, 0.0
      %v510 = vadd.f32 %v508, %v509
      %v511 = vsel %vm123, %v481, 0.0
      %v512 = vadd.f32 %v510, %v511
      %v513 = vsel %vm123, %v485, 0.0
      %v514 = vadd.f32 %v512, %v513
      %v515 = vsel %vm123, %v489, 0.0
      %v516 = vadd.f32 %v514, %v515
      %v517 = vsel %vm123, %v493, 0.0
      %v518 = vadd.f32 %v516, %v517
      %v519 = vsel %vm123, %v497, 0.0
      %v520 = vadd.f32 %v518, %v519
      %521 = vadd.xlane.f32.xlu0 %v520
      %v522 = vpop.xlane.xlu0 %521
      %v523 = vrot.slane %v522, 4
      %v524 = vadd.f32 %v522, %v523
      %v525 = vrot.slane %v524, 2
      %v526 = vadd.f32 %v524, %v525
      %v527 = vrot.slane %v526, 1
      %v528 = vadd.f32 %v526, %v527
      %s529 = vtos %v528
      %s530 = scalar_lea.smem [#allocation4], 1
      %531 = sst [smem:[%s530]] %s529
    $region17: #{dice_loss.1} parent=1 // pred_fallthru
      _
    // Predicated region
    $region18: #{dice_loss.1} parent=1 // pred_check
      _
    $region19: #{dice_loss.1} parent=1 // pred_check_branch
      %533 = sbr.rel (0) target = $region21
    $region20: #{dice_loss.1} parent=1 // pred_region
      %s535 = ssub.s32 16, 16
      %536 = vsyncadd [#allocation5], %s535
      %s538 = sshll.u32 %s2, 4
      %s539 = int_to_ptr.vmem [resolvable:$true] %s538
      %541 = dma.smem_to_vmem [#allocation4], 16, %s539, [#allocation5]
    $region21: #{dice_loss.1} parent=1 // pred_fallthru
      _
    // Predicated region
    $region22: #{dice_loss.1} parent=1 // pred_check
      _
    $region23: #{dice_loss.1} parent=1 // pred_check_branch
      %543 = sbr.rel (0) target = $region25
    $region24: #{dice_loss.1} parent=1 // pred_region
      %544 = dma.done [#allocation5], 16
    $region25: #{dice_loss.1} parent=1 // pred_fallthru
      _
    %545 = sfence
    %546 = vsyncpa [#allocation5], 1

</llo_original>
